<compile_context>
chip_gen: v5e
topology: v5e:2x2
jax: 0.10.0
libtpu: 0.0.40
codegen_flags: <defaults>
</compile_context>

<pallas_src>
import jax
import jax.numpy as jnp
import numpy as np
from jax.experimental import pallas as pl
from jax.experimental.pallas import tpu as pltpu


def convkb_kernel(h_ref, r_ref, t_ref, w0_ref, w1_ref, w2_ref, cb_ref,
                  fcw_ref, fcb_ref, out_ref):
    # h/r/t   : (TB, D)   f32 VMEM   batch tile of embeddings
    # w0/w1/w2: (1, F*D)  f32 VMEM   conv weights, channel-major expansion
    # cb      : (1, F*D)  f32 VMEM   conv bias, channel-major expansion
    # fcw     : (1, F*D)  f32 VMEM   fc weight (== PyTorch (1, F*D) flatten order)
    # fcb     : (1, 1)    f32 VMEM   fc bias
    # out     : (TB, 1)   f32 VMEM
    D = h_ref.shape[1]
    FD = fcw_ref.shape[1]
    reps = FD // D                      # == num_filters (static)

    h = h_ref[...]
    r = r_ref[...]
    t = t_ref[...]

    # Flatten the filter axis into the lane axis: (TB, F*D), index f*D + d.
    h_t = jnp.tile(h, (1, reps))
    r_t = jnp.tile(r, (1, reps))
    t_t = jnp.tile(t, (1, reps))

    # Conv2d(1, F, (3,1)) + bias, fully lane-dense — pure VPU work.
    conv = (w0_ref[...] * h_t + w1_ref[...] * r_t + w2_ref[...] * t_t
            + cb_ref[...])
    act = jnp.maximum(conv, 0.0)        # ReLU

    # fc: elementwise multiply then ONE cross-lane reduction per tile.
    score = jnp.sum(act * fcw_ref[...], axis=-1, keepdims=True)  # (TB, 1)
    out_ref[...] = score + fcb_ref[...]


def convkb_forward(h_idx, t_idx, r_idx, params, *, block_b=1024):
    ent_emb = params["ent_emb"]
    rel_emb = params["rel_emb"]
    D = ent_emb.shape[1]
    F = params["conv_w"].shape[0]

    # Embedding lookups (glue, stays in plain JAX).
    # TODO(synk): for very large batches, fuse the gather into the kernel via
    # scalar-prefetched indices + DMA gather to avoid the HBM round-trip.
    h_e = ent_emb[h_idx].astype(jnp.float32)   # (B, D)
    t_e = ent_emb[t_idx].astype(jnp.float32)   # (B, D)
    r_e = rel_emb[r_idx].astype(jnp.float32)   # (B, D)
    B = h_e.shape[0]

    # Lane-dense, channel-major (index f*D + d) parameter expansion.
    conv_w = params["conv_w"].astype(jnp.float32)              # (F, 3)
    w0 = jnp.repeat(conv_w[:, 0], D).reshape(1, F * D)
    w1 = jnp.repeat(conv_w[:, 1], D).reshape(1, F * D)
    w2 = jnp.repeat(conv_w[:, 2], D).reshape(1, F * D)
    cb = jnp.repeat(params["conv_b"].astype(jnp.float32), D).reshape(1, F * D)
    # PyTorch flatten of (B, F, 1, D) is channel-major: index = f*D + d,
    # so the (1, F*D) fc weight is used as-is.
    fcw = params["fc_w"].astype(jnp.float32).reshape(1, F * D)
    fcb = params["fc_b"].astype(jnp.float32).reshape(1, 1)

    # Batch tile: multiple of 8 sublanes, capped at block_b; pad B up.
    tb = min(block_b, ((B + 7) // 8) * 8)
    tb = ((tb + 7) // 8) * 8
    b_pad = ((B + tb - 1) // tb) * tb
    pad = b_pad - B
    if pad:
        h_p = jnp.pad(h_e, ((0, pad), (0, 0)))
        r_p = jnp.pad(r_e, ((0, pad), (0, 0)))
        t_p = jnp.pad(t_e, ((0, pad), (0, 0)))
    else:
        h_p, r_p, t_p = h_e, r_e, t_e

    grid = (b_pad // tb,)
    emb_spec = pl.BlockSpec((tb, D), lambda i: (i, 0))
    par_spec = pl.BlockSpec((1, F * D), lambda i: (0, 0))
    fcb_spec = pl.BlockSpec((1, 1), lambda i: (0, 0))

    f_out = pl.pallas_call(
        convkb_kernel,
        out_shape=jax.ShapeDtypeStruct((b_pad, 1), jnp.float32),
        grid_spec=pltpu.PrefetchScalarGridSpec(
            num_scalar_prefetch=0,
            grid=grid,
            in_specs=[
                emb_spec, emb_spec, emb_spec,        # h, r, t
                par_spec, par_spec, par_spec,        # w0, w1, w2
                par_spec,                            # conv bias (expanded)
                par_spec,                            # fc weight (flat)
                fcb_spec,                            # fc bias
            ],
            out_specs=pl.BlockSpec((tb, 1), lambda i: (i, 0)),
        ),
        compiler_params=pltpu.CompilerParams(
            dimension_semantics=("parallel",)),
    )(h_p, r_p, t_p, w0, w1, w2, cb, fcw, fcb)

    f_out = f_out[:B]

    return (
        f_out,                          # (B, 1)
        h_e.reshape(B, 1, 1, D),
        t_e.reshape(B, 1, 1, D),
        r_e.reshape(B, 1, 1, D),
    )


def reference_forward(h_idx, t_idx, r_idx, params):
    """Pure-JAX reference matching the PyTorch module exactly (VPU-only math)."""
    ent_emb, rel_emb = params["ent_emb"], params["rel_emb"]
    conv_w, conv_b = params["conv_w"], params["conv_b"]
    fc_w, fc_b = params["fc_w"], params["fc_b"]
    h_e = ent_emb[h_idx]
    t_e = ent_emb[t_idx]
    r_e = rel_emb[r_idx]
    B = h_e.shape[0]
    conv = (conv_w[:, 0][None, :, None] * h_e[:, None, :]
            + conv_w[:, 1][None, :, None] * r_e[:, None, :]
            + conv_w[:, 2][None, :, None] * t_e[:, None, :]
            + conv_b[None, :, None])                        # (B, F, D)
    act = jnp.maximum(conv, 0.0)
    flat = act.reshape(B, -1)                               # channel-major flatten
    return jnp.sum(flat * fc_w, axis=-1, keepdims=True) + fc_b   # (B, 1)


if __name__ == "__main__":
    key = jax.random.PRNGKey(0)
    entity_total, relation_total = 100, 20
    embedding_size, num_filters, batch = 32, 8, 12   # batch not a multiple of 8 -> exercises padding
    D, F, B = embedding_size, num_filters, batch

    keys = jax.random.split(key, 8)
    # nn.Embedding default: N(0, 1)
    ent_emb = jax.random.normal(keys[0], (entity_total, D), jnp.float32)
    rel_emb = jax.random.normal(keys[1], (relation_total, D), jnp.float32)
    # Conv weight fixed to num_filters * [0.1, 0.1, -0.1], shape (F,1,3,1) -> (F,3)
    conv_w = jnp.tile(jnp.array([0.1, 0.1, -0.1], jnp.float32), (F, 1))
    # Conv bias: default uniform(-1/sqrt(fan_in), 1/sqrt(fan_in)), fan_in = 3
    cb_bound = 1.0 / np.sqrt(3.0)
    conv_b = jax.random.uniform(keys[2], (F,), jnp.float32, -cb_bound, cb_bound)
    # fc: Linear(D*F, 1), default uniform(-1/sqrt(D*F), 1/sqrt(D*F))
    fc_bound = 1.0 / np.sqrt(D * F)
    fc_w = jax.random.uniform(keys[3], (1, D * F), jnp.float32, -fc_bound, fc_bound)
    fc_b = jax.random.uniform(keys[4], (1,), jnp.float32, -fc_bound, fc_bound)

    h_idx = jax.random.randint(keys[5], (B,), 0, entity_total)
    t_idx = jax.random.randint(keys[6], (B,), 0, entity_total)
    r_idx = jax.random.randint(keys[7], (B,), 0, relation_total)

    params = dict(ent_emb=ent_emb, rel_emb=rel_emb, conv_w=conv_w,
                  conv_b=conv_b, fc_w=fc_w, fc_b=fc_b)

    f_out, h_e, t_e, r_e = convkb_forward(h_idx, t_idx, r_idx, params)
    jax.block_until_ready(f_out)

    ref = reference_forward(h_idx, t_idx, r_idx, params)
    assert f_out.shape == (B, 1)
    assert h_e.shape == (B, 1, 1, D) and t_e.shape == (B, 1, 1, D) and r_e.shape == (B, 1, 1, D)
    np.testing.assert_allclose(np.asarray(f_out), np.asarray(ref), rtol=1e-4, atol=1e-5)

    print("KERNEL_OK")
</pallas_src>

<mosaic_0001>
module attributes {stable_mosaic.version = 11 : i64} {
  func.func @convkb_kernel(%arg0: i32, %arg1: memref<16x32xf32, #tpu.memory_space<vmem>>, %arg2: memref<16x32xf32, #tpu.memory_space<vmem>>, %arg3: memref<16x32xf32, #tpu.memory_space<vmem>>, %arg4: memref<1x256xf32, #tpu.memory_space<vmem>>, %arg5: memref<1x256xf32, #tpu.memory_space<vmem>>, %arg6: memref<1x256xf32, #tpu.memory_space<vmem>>, %arg7: memref<1x256xf32, #tpu.memory_space<vmem>>, %arg8: memref<1x256xf32, #tpu.memory_space<vmem>>, %arg9: memref<1x1xf32, #tpu.memory_space<vmem>>, %arg10: memref<16x1xf32, #tpu.memory_space<vmem>>) attributes {dimension_semantics = [#tpu.dimension_semantics<parallel>], iteration_bounds = array<i64: 1>, scalar_prefetch = 0 : i64, scratch_operands = 0 : i64, tpu.core_type = #tpu.core_type<tc>, window_params = [{transform_indices = @transform_0, window_bounds = array<i64: 16, 32>}, {transform_indices = @transform_1, window_bounds = array<i64: 16, 32>}, {transform_indices = @transform_2, window_bounds = array<i64: 16, 32>}, {pipeline_mode = #tpu.pipeline_mode<synchronous>, transform_indices = @transform_3, window_bounds = array<i64: 1, 256>}, {pipeline_mode = #tpu.pipeline_mode<synchronous>, transform_indices = @transform_4, window_bounds = array<i64: 1, 256>}, {pipeline_mode = #tpu.pipeline_mode<synchronous>, transform_indices = @transform_5, window_bounds = array<i64: 1, 256>}, {pipeline_mode = #tpu.pipeline_mode<synchronous>, transform_indices = @transform_6, window_bounds = array<i64: 1, 256>}, {pipeline_mode = #tpu.pipeline_mode<synchronous>, transform_indices = @transform_7, window_bounds = array<i64: 1, 256>}, {pipeline_mode = #tpu.pipeline_mode<synchronous>, transform_indices = @transform_8, window_bounds = array<i64: 1, 1>}, {transform_indices = @transform_9, window_bounds = array<i64: 16, 1>}]} {
    %c0 = arith.constant 0 : index
    %c0_0 = arith.constant 0 : index
    %0 = vector.load %arg1[%c0, %c0_0] : memref<16x32xf32, #tpu.memory_space<vmem>>, vector<16x32xf32>
    %c0_1 = arith.constant 0 : index
    %c0_2 = arith.constant 0 : index
    %1 = vector.load %arg2[%c0_1, %c0_2] : memref<16x32xf32, #tpu.memory_space<vmem>>, vector<16x32xf32>
    %c0_3 = arith.constant 0 : index
    %c0_4 = arith.constant 0 : index
    %2 = vector.load %arg3[%c0_3, %c0_4] : memref<16x32xf32, #tpu.memory_space<vmem>>, vector<16x32xf32>
    %3 = tpu.concatenate %0, %0, %0, %0, %0, %0, %0, %0 in 1 : vector<16x32xf32>, vector<16x32xf32>, vector<16x32xf32>, vector<16x32xf32>, vector<16x32xf32>, vector<16x32xf32>, vector<16x32xf32>, vector<16x32xf32> -> vector<16x256xf32>
    %4 = tpu.concatenate %1, %1, %1, %1, %1, %1, %1, %1 in 1 : vector<16x32xf32>, vector<16x32xf32>, vector<16x32xf32>, vector<16x32xf32>, vector<16x32xf32>, vector<16x32xf32>, vector<16x32xf32>, vector<16x32xf32> -> vector<16x256xf32>
    %5 = tpu.concatenate %2, %2, %2, %2, %2, %2, %2, %2 in 1 : vector<16x32xf32>, vector<16x32xf32>, vector<16x32xf32>, vector<16x32xf32>, vector<16x32xf32>, vector<16x32xf32>, vector<16x32xf32>, vector<16x32xf32> -> vector<16x256xf32>
    %c0_5 = arith.constant 0 : index
    %c0_6 = arith.constant 0 : index
    %6 = vector.load %arg4[%c0_5, %c0_6] : memref<1x256xf32, #tpu.memory_space<vmem>>, vector<1x256xf32>
    %7 = vector.broadcast %6 : vector<1x256xf32> to vector<16x256xf32>
    %8 = arith.mulf %7, %3 : vector<16x256xf32>
    %c0_7 = arith.constant 0 : index
    %c0_8 = arith.constant 0 : index
    %9 = vector.load %arg5[%c0_7, %c0_8] : memref<1x256xf32, #tpu.memory_space<vmem>>, vector<1x256xf32>
    %10 = vector.broadcast %9 : vector<1x256xf32> to vector<16x256xf32>
    %11 = arith.mulf %10, %4 : vector<16x256xf32>
    %12 = arith.addf %8, %11 : vector<16x256xf32>
    %c0_9 = arith.constant 0 : index
    %c0_10 = arith.constant 0 : index
    %13 = vector.load %arg6[%c0_9, %c0_10] : memref<1x256xf32, #tpu.memory_space<vmem>>, vector<1x256xf32>
    %14 = vector.broadcast %13 : vector<1x256xf32> to vector<16x256xf32>
    %15 = arith.mulf %14, %5 : vector<16x256xf32>
    %16 = arith.addf %12, %15 : vector<16x256xf32>
    %c0_11 = arith.constant 0 : index
    %c0_12 = arith.constant 0 : index
    %17 = vector.load %arg7[%c0_11, %c0_12] : memref<1x256xf32, #tpu.memory_space<vmem>>, vector<1x256xf32>
    %18 = vector.broadcast %17 : vector<1x256xf32> to vector<16x256xf32>
    %19 = arith.addf %16, %18 : vector<16x256xf32>
    %cst = arith.constant 0.000000e+00 : f32
    %20 = vector.broadcast %cst : f32 to vector<16x256xf32>
    %21 = arith.maximumf %19, %20 : vector<16x256xf32>
    %c0_13 = arith.constant 0 : index
    %c0_14 = arith.constant 0 : index
    %22 = vector.load %arg8[%c0_13, %c0_14] : memref<1x256xf32, #tpu.memory_space<vmem>>, vector<1x256xf32>
    %23 = vector.broadcast %22 : vector<1x256xf32> to vector<16x256xf32>
    %24 = arith.mulf %21, %23 : vector<16x256xf32>
    %cst_15 = arith.constant dense<0.000000e+00> : vector<16xf32>
    %25 = vector.multi_reduction <add>, %24, %cst_15 [1] : vector<16x256xf32> to vector<16xf32>
    %26 = vector.shape_cast %25 : vector<16xf32> to vector<16x1xf32>
    %c0_16 = arith.constant 0 : index
    %c0_17 = arith.constant 0 : index
    %27 = vector.load %arg9[%c0_16, %c0_17] : memref<1x1xf32, #tpu.memory_space<vmem>>, vector<1x1xf32>
    %28 = vector.broadcast %27 : vector<1x1xf32> to vector<16x1xf32>
    %29 = arith.addf %26, %28 : vector<16x1xf32>
    %c0_18 = arith.constant 0 : index
    %c0_19 = arith.constant 0 : index
    %30 = vector.load %arg10[%c0_18, %c0_19] : memref<16x1xf32, #tpu.memory_space<vmem>>, vector<16x1xf32>
    tpu.vector_store %arg10[%c0_18, %c0_19], %29 {strides = array<i32>} : memref<16x1xf32, #tpu.memory_space<vmem>>, vector<16x1xf32>,
    return
  }
  func.func @transform_0(%arg0: i32) -> (i32, i32) {
    %c0_i32 = arith.constant 0 : i32
    %c0_i32_0 = arith.constant 0 : i32
    return %arg0, %c0_i32 : i32, i32
  }
  func.func @transform_1(%arg0: i32) -> (i32, i32) {
    %c0_i32 = arith.constant 0 : i32
    %c0_i32_0 = arith.constant 0 : i32
    return %arg0, %c0_i32 : i32, i32
  }
  func.func @transform_2(%arg0: i32) -> (i32, i32) {
    %c0_i32 = arith.constant 0 : i32
    %c0_i32_0 = arith.constant 0 : i32
    return %arg0, %c0_i32 : i32, i32
  }
  func.func @transform_3(%arg0: i32) -> (i32, i32) {
    %c0_i32 = arith.constant 0 : i32
    %c0_i32_0 = arith.constant 0 : i32
    %c0_i32_1 = arith.constant 0 : i32
    return %c0_i32, %c0_i32_0 : i32, i32
  }
  func.func @transform_4(%arg0: i32) -> (i32, i32) {
    %c0_i32 = arith.constant 0 : i32
    %c0_i32_0 = arith.constant 0 : i32
    %c0_i32_1 = arith.constant 0 : i32
    return %c0_i32, %c0_i32_0 : i32, i32
  }
  func.func @transform_5(%arg0: i32) -> (i32, i32) {
    %c0_i32 = arith.constant 0 : i32
    %c0_i32_0 = arith.constant 0 : i32
    %c0_i32_1 = arith.constant 0 : i32
    return %c0_i32, %c0_i32_0 : i32, i32
  }
  func.func @transform_6(%arg0: i32) -> (i32, i32) {
    %c0_i32 = arith.constant 0 : i32
    %c0_i32_0 = arith.constant 0 : i32
    %c0_i32_1 = arith.constant 0 : i32
    return %c0_i32, %c0_i32_0 : i32, i32
  }
  func.func @transform_7(%arg0: i32) -> (i32, i32) {
    %c0_i32 = arith.constant 0 : i32
    %c0_i32_0 = arith.constant 0 : i32
    %c0_i32_1 = arith.constant 0 : i32
    return %c0_i32, %c0_i32_0 : i32, i32
  }
  func.func @transform_8(%arg0: i32) -> (i32, i32) {
    %c0_i32 = arith.constant 0 : i32
    %c0_i32_0 = arith.constant 0 : i32
    %c0_i32_1 = arith.constant 0 : i32
    return %c0_i32, %c0_i32_0 : i32, i32
  }
  func.func @transform_9(%arg0: i32) -> (i32, i32) {
    %c0_i32 = arith.constant 0 : i32
    %c0_i32_0 = arith.constant 0 : i32
    return %arg0, %c0_i32 : i32, i32
  }
}

</mosaic_0001>

<llo_original>
// kernel: tpu_custom_call.1
$region0: #{tpu_custom_call.1}
  #allocation0 [shape = 'u32[]', space=smem, size = 0x4, offset = 0x4, fixed_abs, tag = 'smem constant byte address 0x4 - core index']
  #allocation1 [shape = 'u32[72,128]{1,0:T(1,128)}', space=vmem, size = 0x9000, scoped, tag = 'internal scratch']
  #allocation2 [shape = 'f32[1,1]{1,0:T(1,128)S(1)}', space=vmem, size = 0x200, scoped, tag = 'scoped memory for tpu_custom_call.1']
  %s0 = inlined_call_operand.hbm [shape: f32[16,32], index: 0, kind: input, shape index: {}]
  %s1 = inlined_call_operand.hbm [shape: f32[16,32], index: 1, kind: input, shape index: {}]
  %s2 = inlined_call_operand.hbm [shape: f32[16,32], index: 2, kind: input, shape index: {}]
  %s3 = inlined_call_operand.vmem [shape: f32[1,256], index: 3, kind: input, shape index: {}]
  %s4 = inlined_call_operand.vmem [shape: f32[1,256], index: 4, kind: input, shape index: {}]
  %s5 = inlined_call_operand.vmem [shape: f32[1,256], index: 5, kind: input, shape index: {}]
  %s6 = inlined_call_operand.hbm [shape: f32[1,256], index: 6, kind: input, shape index: {}]
  %s7 = inlined_call_operand.vmem [shape: f32[1,256], index: 7, kind: input, shape index: {}]
  %s8 = inlined_call_operand.<no memory space> [shape: f32[1,1], index: 8, kind: input, shape index: {}]
  %s9 = inlined_call_operand.vmem [shape: f32[16,1], index: 9, kind: output, shape index: {}]
  %s10 = sld [smem:[#allocation0]]
  $region62: #{tpu_custom_call.1} parent=0
    _
  %s12 = ssub.s32 1, %s10
  %s13 = scalar_select 0, %s12, %s10
  %v14 = vstv %s8
  %15 = vst [vmem:[#allocation2] sm:$0x1] %v14
  $region1: #{tpu_custom_call.1} parent=0
    #allocation3 [shape = 'u8[8192]{0}', space=vmem, size = 0x2000, scoped, tag = 'input window, operand 0, single buffered']
    #allocation4 [shape = 's32[1]{0}', space=sflag, size = 0x4, scoped, tag = 'scoped memory for tpu_custom_call.1']
    #allocation5 [shape = 'u8[8192]{0}', space=vmem, size = 0x2000, scoped, tag = 'input window, operand 1, single buffered']
    #allocation6 [shape = 's32[1]{0}', space=sflag, size = 0x4, scoped, tag = 'scoped memory for tpu_custom_call.1']
    #allocation7 [shape = 'u8[8192]{0}', space=vmem, size = 0x2000, scoped, tag = 'input window, operand 2, single buffered']
    #allocation8 [shape = 'u8[1024]{0}', space=vmem, size = 0x400, scoped, tag = 'input window, operand 6, single buffered']
    #allocation9 [shape = 's32[1]{0}', space=sflag, size = 0x4, scoped, tag = 'scoped memory for tpu_custom_call.1']
    %16 = vsyncpa [#allocation4], 0
    %17 = vsyncpa [#allocation6], 0
    %18 = vsyncpa [#allocation9], 0
    // Predicated region
    $region2: #{tpu_custom_call.1} parent=1 // pred_check
      _
    $region3: #{tpu_custom_call.1} parent=1 // pred_check_branch
      %20 = sbr.rel (0) target = $region5
    $region4: #{tpu_custom_call.1} parent=1 // pred_region
      %22 = vsyncadd [#allocation4], 0
      %s23 = sshll.u32 %s0, 4
      %s24 = int_to_ptr.hbm [resolvable:$true] %s23
      %s25 = sshll.u32 [#allocation3], 4
      %s26 = int_to_ptr.vmem [resolvable:$true] %s25
      %31 = dma.hbm_to_vmem [thread:$0]  %s24, 256, %s26, [#allocation4], 128, 128, 8
    $region5: #{tpu_custom_call.1} parent=1 // pred_fallthru
      _
    // Predicated region
    $region6: #{tpu_custom_call.1} parent=1 // pred_check
      _
    $region7: #{tpu_custom_call.1} parent=1 // pred_check_branch
      %33 = sbr.rel (0) target = $region9
    $region8: #{tpu_custom_call.1} parent=1 // pred_region
      %35 = vsyncadd [#allocation6], 0
      %s36 = sshll.u32 %s1, 4
      %s37 = int_to_ptr.hbm [resolvable:$true] %s36
      %s38 = sshll.u32 [#allocation5], 4
      %s39 = int_to_ptr.vmem [resolvable:$true] %s38
      %44 = dma.hbm_to_vmem [thread:$0]  %s37, 256, %s39, [#allocation6], 128, 128, 8
    $region9: #{tpu_custom_call.1} parent=1 // pred_fallthru
      _
    // Predicated region
    $region10: #{tpu_custom_call.1} parent=1 // pred_check
      _
    $region11: #{tpu_custom_call.1} parent=1 // pred_check_branch
      %46 = sbr.rel (0) target = $region13
    $region12: #{tpu_custom_call.1} parent=1 // pred_region
      %48 = vsyncadd [#allocation6], 0
      %s49 = sshll.u32 %s2, 4
      %s50 = int_to_ptr.hbm [resolvable:$true] %s49
      %s51 = sshll.u32 [#allocation7], 4
      %s52 = int_to_ptr.vmem [resolvable:$true] %s51
      %57 = dma.hbm_to_vmem [thread:$0]  %s50, 256, %s52, [#allocation6], 128, 128, 8
    $region13: #{tpu_custom_call.1} parent=1 // pred_fallthru
      _
    // Predicated region
    $region14: #{tpu_custom_call.1} parent=1 // pred_check
      _
    $region15: #{tpu_custom_call.1} parent=1 // pred_check_branch
      %59 = sbr.rel (0) target = $region17
    $region16: #{tpu_custom_call.1} parent=1 // pred_region
      _
    $region17: #{tpu_custom_call.1} parent=1 // pred_fallthru
      _
    // Predicated region
    $region18: #{tpu_custom_call.1} parent=1 // pred_check
      _
    $region19: #{tpu_custom_call.1} parent=1 // pred_check_branch
      %61 = sbr.rel (0) target = $region21
    $region20: #{tpu_custom_call.1} parent=1 // pred_region
      _
    $region21: #{tpu_custom_call.1} parent=1 // pred_fallthru
      _
    // Predicated region
    $region22: #{tpu_custom_call.1} parent=1 // pred_check
      _
    $region23: #{tpu_custom_call.1} parent=1 // pred_check_branch
      %63 = sbr.rel (0) target = $region25
    $region24: #{tpu_custom_call.1} parent=1 // pred_region
      _
    $region25: #{tpu_custom_call.1} parent=1 // pred_fallthru
      _
    // Predicated region
    $region26: #{tpu_custom_call.1} parent=1 // pred_check
      _
    $region27: #{tpu_custom_call.1} parent=1 // pred_check_branch
      %65 = sbr.rel (0) target = $region29
    $region28: #{tpu_custom_call.1} parent=1 // pred_region
      %67 = vsyncadd [#allocation9], 0
      %s69 = sshll.u32 %s6, 4
      %s70 = int_to_ptr.hbm [resolvable:$true] %s69
      %s71 = sshll.u32 [#allocation8], 4
      %s72 = int_to_ptr.vmem [resolvable:$true] %s71
      %74 = dma.hbm_to_vmem [thread:$0]  %s70, 32, %s72, [#allocation9]
    $region29: #{tpu_custom_call.1} parent=1 // pred_fallthru
      _
    // Predicated region
    $region30: #{tpu_custom_call.1} parent=1 // pred_check
      _
    $region31: #{tpu_custom_call.1} parent=1 // pred_check_branch
      %76 = sbr.rel (0) target = $region33
    $region32: #{tpu_custom_call.1} parent=1 // pred_region
      _
    $region33: #{tpu_custom_call.1} parent=1 // pred_fallthru
      _
    // Predicated region
    $region34: #{tpu_custom_call.1} parent=1 // pred_check
      _
    $region35: #{tpu_custom_call.1} parent=1 // pred_check_branch
      %78 = sbr.rel (0) target = $region37
    $region36: #{tpu_custom_call.1} parent=1 // pred_region
      _
    $region37: #{tpu_custom_call.1} parent=1 // pred_fallthru
      _
    // Predicated region
    $region38: #{tpu_custom_call.1} parent=1 // pred_check
      _
    $region39: #{tpu_custom_call.1} parent=1 // pred_check_branch
      %80 = sbr.rel (0) target = $region41
    $region40: #{tpu_custom_call.1} parent=1 // pred_region
      %82 = dma.done [#allocation4], 256
    $region41: #{tpu_custom_call.1} parent=1 // pred_fallthru
      _
    // Predicated region
    $region42: #{tpu_custom_call.1} parent=1 // pred_check
      _
    $region43: #{tpu_custom_call.1} parent=1 // pred_check_branch
      %84 = sbr.rel (0) target = $region45
    $region44: #{tpu_custom_call.1} parent=1 // pred_region
      %86 = dma.done [#allocation6], 256
    $region45: #{tpu_custom_call.1} parent=1 // pred_fallthru
      _
    // Predicated region
    $region46: #{tpu_custom_call.1} parent=1 // pred_check
      _
    $region47: #{tpu_custom_call.1} parent=1 // pred_check_branch
      %88 = sbr.rel (0) target = $region49
    $region48: #{tpu_custom_call.1} parent=1 // pred_region
      %90 = dma.done [#allocation6], 256
    $region49: #{tpu_custom_call.1} parent=1 // pred_fallthru
      _
    // Predicated region
    $region50: #{tpu_custom_call.1} parent=1 // pred_check
      _
    $region51: #{tpu_custom_call.1} parent=1 // pred_check_branch
      %92 = sbr.rel (0) target = $region53
    $region52: #{tpu_custom_call.1} parent=1 // pred_region
      %94 = dma.done [#allocation9], 32
    $region53: #{tpu_custom_call.1} parent=1 // pred_fallthru
      _
    %v95 = vld [vmem:[#allocation3] sm:$0xff]
    %v96 = vld [vmem:[#allocation3 + $0x8] sm:$0xff]
    %v97 = vld [vmem:[#allocation5] sm:$0xff]
    %v98 = vld [vmem:[#allocation5 + $0x8] sm:$0xff]
    %v99 = vld [vmem:[#allocation7] sm:$0xff]
    %v100 = vld [vmem:[#allocation7 + $0x8] sm:$0xff]
    %103 = vrot.lane.b32.xlu0 %v95, 32
    %v104 = vpop.permute.xlu0 %103
    %105 = vrot.lane.b32.xlu0 %v96, 32
    %v106 = vpop.permute.xlu0 %105
    %109 = vrot.lane.b32.xlu0 %v95, 64
    %v110 = vpop.permute.xlu0 %109
    %111 = vrot.lane.b32.xlu0 %v96, 64
    %v112 = vpop.permute.xlu0 %111
    %115 = vrot.lane.b32.xlu0 %v95, 96
    %v116 = vpop.permute.xlu0 %115
    %117 = vrot.lane.b32.xlu0 %v96, 96
    %v118 = vpop.permute.xlu0 %117
    %vm121 = vcmask 261120
    %v122 = vsel %vm121, %v95, %v104
    %v123 = vsel %vm121, %v96, %v106
    %vm124 = vcmask 523264
    %v125 = vsel %vm124, %v122, %v110
    %v126 = vsel %vm124, %v123, %v112
    %vm127 = vcmask 785408
    %v128 = vsel %vm127, %v125, %v116
    %v129 = vsel %vm127, %v126, %v118
    %132 = vrot.lane.b32.xlu0 %v97, 32
    %v133 = vpop.permute.xlu0 %132
    %134 = vrot.lane.b32.xlu0 %v98, 32
    %v135 = vpop.permute.xlu0 %134
    %138 = vrot.lane.b32.xlu0 %v97, 64
    %v139 = vpop.permute.xlu0 %138
    %140 = vrot.lane.b32.xlu0 %v98, 64
    %v141 = vpop.permute.xlu0 %140
    %144 = vrot.lane.b32.xlu0 %v97, 96
    %v145 = vpop.permute.xlu0 %144
    %146 = vrot.lane.b32.xlu0 %v98, 96
    %v147 = vpop.permute.xlu0 %146
    %v150 = vsel %vm121, %v97, %v133
    %v151 = vsel %vm121, %v98, %v135
    %v152 = vsel %vm124, %v150, %v139
    %v153 = vsel %vm124, %v151, %v141
    %v154 = vsel %vm127, %v152, %v145
    %v155 = vsel %vm127, %v153, %v147
    %158 = vrot.lane.b32.xlu0 %v99, 32
    %v159 = vpop.permute.xlu0 %158
    %160 = vrot.lane.b32.xlu0 %v100, 32
    %v161 = vpop.permute.xlu0 %160
    %164 = vrot.lane.b32.xlu0 %v99, 64
    %v165 = vpop.permute.xlu0 %164
    %166 = vrot.lane.b32.xlu0 %v100, 64
    %v167 = vpop.permute.xlu0 %166
    %170 = vrot.lane.b32.xlu0 %v99, 96
    %v171 = vpop.permute.xlu0 %170
    %172 = vrot.lane.b32.xlu0 %v100, 96
    %v173 = vpop.permute.xlu0 %172
    %v176 = vsel %vm121, %v99, %v159
    %v177 = vsel %vm121, %v100, %v161
    %v178 = vsel %vm124, %v176, %v165
    %v179 = vsel %vm124, %v177, %v167
    %v180 = vsel %vm127, %v178, %v171
    %v181 = vsel %vm127, %v179, %v173
    %v182 = vld [vmem:[%s3] sm:$0x3]
    %v184 = vperm.slane %v182, 0
    %v185 = vperm.slane %v182, 1
    %v188 = vmul.f32 %v184, %v128
    %v189 = vmul.f32 %v185, %v128
    %v190 = vmul.f32 %v184, %v129
    %v191 = vmul.f32 %v185, %v129
    %v192 = vld [vmem:[%s4] sm:$0x3]
    %v194 = vperm.slane %v192, 0
    %v195 = vperm.slane %v192, 1
    %v198 = vmul.f32 %v194, %v154
    %v199 = vmul.f32 %v195, %v154
    %v200 = vmul.f32 %v194, %v155
    %v201 = vmul.f32 %v195, %v155
    %v202 = vadd.f32 %v188, %v198
    %v203 = vadd.f32 %v189, %v199
    %v204 = vadd.f32 %v190, %v200
    %v205 = vadd.f32 %v191, %v201
    %v206 = vld [vmem:[%s5] sm:$0x3]
    %v208 = vperm.slane %v206, 0
    %v209 = vperm.slane %v206, 1
    %v212 = vmul.f32 %v208, %v180
    %v213 = vmul.f32 %v209, %v180
    %v214 = vmul.f32 %v208, %v181
    %v215 = vmul.f32 %v209, %v181
    %v216 = vadd.f32 %v202, %v212
    %v217 = vadd.f32 %v203, %v213
    %v218 = vadd.f32 %v204, %v214
    %v219 = vadd.f32 %v205, %v215
    %v220 = vld [vmem:[#allocation8] sm:$0x3]
    %v222 = vperm.slane %v220, 0
    %v223 = vperm.slane %v220, 1
    %v226 = vadd.f32 %v216, %v222
    %v227 = vadd.f32 %v217, %v223
    %v228 = vadd.f32 %v218, %v222
    %v229 = vadd.f32 %v219, %v223
    %v230 = vmax.f32 %v226, 0.0
    %v231 = vmax.f32 %v227, 0.0
    %v232 = vmax.f32 %v228, 0.0
    %v233 = vmax.f32 %v229, 0.0
    %v234 = vld [vmem:[%s7] sm:$0x3]
    %v236 = vperm.slane %v234, 0
    %v237 = vperm.slane %v234, 1
    %v240 = vmul.f32 %v230, %v236
    %v241 = vmul.f32 %v231, %v237
    %v242 = vmul.f32 %v232, %v236
    %v243 = vmul.f32 %v233, %v237
    %v244 = vadd.f32 %v240, %v241
    %245 = vadd.xlane.f32.xlu0 %v244
    %v246 = vpop.xlane.xlu0 %245
    %v247 = vadd.f32 %v242, %v243
    %248 = vadd.xlane.f32.xlu0 %v247
    %v249 = vpop.xlane.xlu0 %248
    %v250 = vld [vmem:[#allocation2] sm:$0x1]
    %v252 = vperm.slane %v250, 0
    %v254 = vadd.f32 %v246, %v252
    %v255 = vadd.f32 %v249, %v252
    %vm256 = vcmask 7168
    %257 = vst.msk [vmem:[%s9] sm:$0xff] %vm256, %v254
    %258 = vst.msk [vmem:[%s9 + $0x8] sm:$0xff] %vm256, %v255
    // Predicated region
    $region54: #{tpu_custom_call.1} parent=1 // pred_check
      _
    $region55: #{tpu_custom_call.1} parent=1 // pred_check_branch
      %260 = sbr.rel (0) target = $region57
    $region56: #{tpu_custom_call.1} parent=1 // pred_region
      _
    $region57: #{tpu_custom_call.1} parent=1 // pred_fallthru
      _
    // Predicated region
    $region58: #{tpu_custom_call.1} parent=1 // pred_check
      _
    $region59: #{tpu_custom_call.1} parent=1 // pred_check_branch
      %262 = sbr.rel (0) target = $region61
    $region60: #{tpu_custom_call.1} parent=1 // pred_region
      _
    $region61: #{tpu_custom_call.1} parent=1 // pred_fallthru
      _
    %263 = vsyncpa [#allocation4], 1
    %264 = vsyncpa [#allocation6], 1
    %265 = vsyncpa [#allocation9], 1

</llo_original>
